<compile_context>
chip_gen: v6e
topology: v6e:2x2x1
jax: 0.10.0
libtpu: 0.0.40
codegen_flags: <defaults>
</compile_context>

<pallas_src>
import jax
import jax.numpy as jnp
from jax.experimental import pallas as pl
from jax.experimental.pallas import tpu as pltpu

INPUT_SIZE = 42
HIDDEN_SIZE = 69
OUTPUT_SIZE = 23
HIDDEN_PAD = 128  # lane-dense padded hidden width


def _round_up(n, m):
    return (n + m - 1) // m * m


def weird_oracle_kernel(x_ref, eps_ref, w1_ref, b1_ref, qn_ref, w2_ref,
                        b2_ref, o_ref):
    # Hidden layer: (b, in) @ (in, hidden_pad) + bias.
    h = jnp.dot(x_ref[...], w1_ref[...],
                preferred_element_type=jnp.float32) + b1_ref[...]
    # quantum_noise * randn_like(h) added pre-ReLU (matches the PyTorch module).
    # Padded hidden lanes have w1 cols == 0, b1 == 0 and qn == 0, so they stay
    # exactly 0 after ReLU and contribute nothing to the second matmul.
    h = jnp.maximum(h + qn_ref[...] * eps_ref[...], 0.0)

    # Output layer: (b, hidden_pad) @ (hidden_pad, out) + bias.
    logits = jnp.dot(h, w2_ref[...],
                     preferred_element_type=jnp.float32) + b2_ref[...]

    # Numerically stable softmax over dim=1.
    m = jnp.max(logits, axis=-1, keepdims=True)
    e = jnp.exp(logits - m)
    o_ref[...] = (e / jnp.sum(e, axis=-1, keepdims=True)).astype(o_ref.dtype)


def weird_oracle(x, w1, b1, qn, w2, b2, noise_key, *, block_b=512):
    """x: (B, 42). w1: (42, 69), b1: (69,), qn: (69,), w2: (69, 23), b2: (23,)."""
    B = x.shape[0]

    # Zero-pad the hidden dim to 128 (host-side, tiny: < 100 KiB of weights).
    hp = HIDDEN_PAD - HIDDEN_SIZE
    w1p = jnp.pad(w1.astype(jnp.float32), ((0, 0), (0, hp)))
    b1p = jnp.pad(b1.reshape(1, HIDDEN_SIZE).astype(jnp.float32),
                  ((0, 0), (0, hp)))
    qnp = jnp.pad(qn.reshape(1, HIDDEN_SIZE).astype(jnp.float32),
                  ((0, 0), (0, hp)))
    w2p = jnp.pad(w2.astype(jnp.float32), ((0, hp), (0, 0)))
    b2p = b2.reshape(1, OUTPUT_SIZE).astype(jnp.float32)

    # Batch tile: >=512 rows for large batches (amortizes the ~0.35 us per-step
    # overhead, ~85% of HBM roofline); small batches just round up to the 8-row
    # sublane multiple.  At 512 rows the double-buffered working set is
    # < 1 MiB, well inside scoped VMEM on v5e/v6e/v7x.
    b_tile = block_b if B >= block_b else _round_up(B, 8)
    b_pad = _round_up(B, b_tile)
    if b_pad != B:
        x = jnp.pad(x, ((0, b_pad - B), (0, 0)))
    n_tiles = b_pad // b_tile

    # Per-element Gaussian noise (randn_like).  Generated with the portable
    # jax.random API (the TPU hardware PRNG has no CPU/interpret lowering) and
    # streamed per batch tile.  Padded hidden lanes are killed by qn == 0.
    eps = jax.random.normal(noise_key, (b_pad, HIDDEN_PAD), dtype=jnp.float32)

    out = pl.pallas_call(
        weird_oracle_kernel,
        out_shape=jax.ShapeDtypeStruct((b_pad, OUTPUT_SIZE), jnp.float32),
        grid=(n_tiles,),
        in_specs=[
            # Streamed per batch tile (double-buffered by the pipeline):
            pl.BlockSpec((b_tile, INPUT_SIZE), lambda i: (i, 0)),
            pl.BlockSpec((b_tile, HIDDEN_PAD), lambda i: (i, 0)),
            # VMEM-resident across all grid steps:
            pl.BlockSpec((INPUT_SIZE, HIDDEN_PAD), lambda i: (0, 0)),
            pl.BlockSpec((1, HIDDEN_PAD), lambda i: (0, 0)),
            pl.BlockSpec((1, HIDDEN_PAD), lambda i: (0, 0)),
            pl.BlockSpec((HIDDEN_PAD, OUTPUT_SIZE), lambda i: (0, 0)),
            pl.BlockSpec((1, OUTPUT_SIZE), lambda i: (0, 0)),
        ],
        out_specs=pl.BlockSpec((b_tile, OUTPUT_SIZE), lambda i: (i, 0)),
        compiler_params=pltpu.CompilerParams(
            dimension_semantics=("parallel",),   # shard batch across TCs (v7x)
            vmem_limit_bytes=32 * 1024 * 1024,
        ),
    )(x.astype(jnp.float32), eps, w1p, b1p, qnp, w2p, b2p)

    return out[:B]


if __name__ == "__main__":
    key = jax.random.PRNGKey(0)
    k_x, k_w1, k_b1, k_qn, k_w2, k_b2, k_eps = jax.random.split(key, 7)

    batch = 2  # module example used (1, 42); use a small demo batch

    # nn.Linear-style uniform(-1/sqrt(fan_in), 1/sqrt(fan_in)) init.
    bound1 = 1.0 / jnp.sqrt(float(INPUT_SIZE))
    w1 = jax.random.uniform(k_w1, (INPUT_SIZE, HIDDEN_SIZE),
                            minval=-bound1, maxval=bound1, dtype=jnp.float32)
    b1 = jax.random.uniform(k_b1, (HIDDEN_SIZE,),
                            minval=-bound1, maxval=bound1, dtype=jnp.float32)
    bound2 = 1.0 / jnp.sqrt(float(HIDDEN_SIZE))
    w2 = jax.random.uniform(k_w2, (HIDDEN_SIZE, OUTPUT_SIZE),
                            minval=-bound2, maxval=bound2, dtype=jnp.float32)
    b2 = jax.random.uniform(k_b2, (OUTPUT_SIZE,),
                            minval=-bound2, maxval=bound2, dtype=jnp.float32)
    # quantum_noise parameter = randn(hidden) * 0.1
    qn = 0.1 * jax.random.normal(k_qn, (HIDDEN_SIZE,), dtype=jnp.float32)

    x = jax.random.normal(k_x, (batch, INPUT_SIZE), dtype=jnp.float32)

    # 1) Full forward with quantum noise.
    out = jax.block_until_ready(weird_oracle(x, w1, b1, qn, w2, b2, k_eps))
    assert out.shape == (batch, OUTPUT_SIZE)
    assert bool(jnp.all(jnp.isfinite(out)))
    assert bool(jnp.all(out >= 0.0))
    assert bool(jnp.all(jnp.abs(jnp.sum(out, axis=1) - 1.0) < 5e-3))

    # 2) Zero-noise check against a pure-JAX reference (with quantum_noise == 0
    #    the forward is deterministic and must match up to fp error).
    out_nz = jax.block_until_ready(
        weird_oracle(x, w1, b1, jnp.zeros_like(qn), w2, b2, k_eps))
    ref = jax.nn.softmax(jnp.maximum(x @ w1 + b1, 0.0) @ w2 + b2, axis=-1)
    assert bool(jnp.all(jnp.abs(out_nz - ref) < 5e-3))

    # 3) Exercise the multi-tile grid path (batch > block_b, not a multiple).
    big_b = 1040
    xb = jax.random.normal(jax.random.PRNGKey(1), (big_b, INPUT_SIZE),
                           dtype=jnp.float32)
    out_big = jax.block_until_ready(
        weird_oracle(xb, w1, b1, qn, w2, b2, jax.random.PRNGKey(2)))
    assert out_big.shape == (big_b, OUTPUT_SIZE)
    assert bool(jnp.all(jnp.abs(jnp.sum(out_big, axis=1) - 1.0) < 5e-3))

    print("KERNEL_OK")
</pallas_src>

<mosaic_0001>
module attributes {stable_mosaic.version = 11 : i64} {
  func.func @weird_oracle_kernel(%arg0: i32, %arg1: memref<8x42xf32, #tpu.memory_space<vmem>>, %arg2: memref<8x128xf32, #tpu.memory_space<vmem>>, %arg3: memref<42x128xf32, #tpu.memory_space<vmem>>, %arg4: memref<1x128xf32, #tpu.memory_space<vmem>>, %arg5: memref<1x128xf32, #tpu.memory_space<vmem>>, %arg6: memref<128x23xf32, #tpu.memory_space<vmem>>, %arg7: memref<1x23xf32, #tpu.memory_space<vmem>>, %arg8: memref<8x23xf32, #tpu.memory_space<vmem>>) attributes {dimension_semantics = [#tpu.dimension_semantics<parallel>], iteration_bounds = array<i64: 1>, scalar_prefetch = 0 : i64, scratch_operands = 0 : i64, tpu.core_type = #tpu.core_type<tc>, window_params = [{transform_indices = @transform_0, window_bounds = array<i64: 8, 42>}, {transform_indices = @transform_1, window_bounds = array<i64: 8, 128>}, {pipeline_mode = #tpu.pipeline_mode<synchronous>, transform_indices = @transform_2, window_bounds = array<i64: 42, 128>}, {pipeline_mode = #tpu.pipeline_mode<synchronous>, transform_indices = @transform_3, window_bounds = array<i64: 1, 128>}, {pipeline_mode = #tpu.pipeline_mode<synchronous>, transform_indices = @transform_4, window_bounds = array<i64: 1, 128>}, {pipeline_mode = #tpu.pipeline_mode<synchronous>, transform_indices = @transform_5, window_bounds = array<i64: 128, 23>}, {pipeline_mode = #tpu.pipeline_mode<synchronous>, transform_indices = @transform_6, window_bounds = array<i64: 1, 23>}, {transform_indices = @transform_7, window_bounds = array<i64: 8, 23>}]} {
    %c0 = arith.constant 0 : index
    %c0_0 = arith.constant 0 : index
    %0 = vector.load %arg1[%c0, %c0_0] : memref<8x42xf32, #tpu.memory_space<vmem>>, vector<8x42xf32>
    %c0_1 = arith.constant 0 : index
    %c0_2 = arith.constant 0 : index
    %1 = vector.load %arg3[%c0_1, %c0_2] : memref<42x128xf32, #tpu.memory_space<vmem>>, vector<42x128xf32>
    %cst = arith.constant dense<0.000000e+00> : vector<8x128xf32>
    %2 = tpu.matmul %0, %1, %cst {dimension_numbers = #tpu.dot_dimension_numbers<[1], [0], [0], [1], [0, 0, 1, 1], [], []>} : vector<8x42xf32>, vector<42x128xf32>, vector<8x128xf32> -> vector<8x128xf32>
    %c0_3 = arith.constant 0 : index
    %c0_4 = arith.constant 0 : index
    %3 = vector.load %arg4[%c0_3, %c0_4] : memref<1x128xf32, #tpu.memory_space<vmem>>, vector<1x128xf32>
    %4 = vector.broadcast %3 : vector<1x128xf32> to vector<8x128xf32>
    %5 = arith.addf %2, %4 : vector<8x128xf32>
    %c0_5 = arith.constant 0 : index
    %c0_6 = arith.constant 0 : index
    %6 = vector.load %arg5[%c0_5, %c0_6] : memref<1x128xf32, #tpu.memory_space<vmem>>, vector<1x128xf32>
    %c0_7 = arith.constant 0 : index
    %c0_8 = arith.constant 0 : index
    %7 = vector.load %arg2[%c0_7, %c0_8] : memref<8x128xf32, #tpu.memory_space<vmem>>, vector<8x128xf32>
    %8 = vector.broadcast %6 : vector<1x128xf32> to vector<8x128xf32>
    %9 = arith.mulf %8, %7 : vector<8x128xf32>
    %10 = arith.addf %5, %9 : vector<8x128xf32>
    %cst_9 = arith.constant 0.000000e+00 : f32
    %11 = vector.broadcast %cst_9 : f32 to vector<8x128xf32>
    %12 = arith.maximumf %10, %11 : vector<8x128xf32>
    %c0_10 = arith.constant 0 : index
    %c0_11 = arith.constant 0 : index
    %13 = vector.load %arg6[%c0_10, %c0_11] : memref<128x23xf32, #tpu.memory_space<vmem>>, vector<128x23xf32>
    %cst_12 = arith.constant dense<0.000000e+00> : vector<8x23xf32>
    %14 = tpu.matmul %12, %13, %cst_12 {dimension_numbers = #tpu.dot_dimension_numbers<[1], [0], [0], [1], [0, 0, 1, 1], [], []>} : vector<8x128xf32>, vector<128x23xf32>, vector<8x23xf32> -> vector<8x23xf32>
    %c0_13 = arith.constant 0 : index
    %c0_14 = arith.constant 0 : index
    %15 = vector.load %arg7[%c0_13, %c0_14] : memref<1x23xf32, #tpu.memory_space<vmem>>, vector<1x23xf32>
    %16 = vector.broadcast %15 : vector<1x23xf32> to vector<8x23xf32>
    %17 = arith.addf %14, %16 : vector<8x23xf32>
    %cst_15 = arith.constant dense<0xFF800000> : vector<8xf32>
    %18 = vector.multi_reduction <maximumf>, %17, %cst_15 [1] : vector<8x23xf32> to vector<8xf32>
    %19 = vector.shape_cast %18 : vector<8xf32> to vector<8x1xf32>
    %20 = vector.broadcast %19 : vector<8x1xf32> to vector<8x23xf32>
    %21 = arith.subf %17, %20 : vector<8x23xf32>
    %22 = math.exp %21 : vector<8x23xf32>
    %cst_16 = arith.constant dense<0.000000e+00> : vector<8xf32>
    %23 = vector.multi_reduction <add>, %22, %cst_16 [1] : vector<8x23xf32> to vector<8xf32>
    %24 = vector.shape_cast %23 : vector<8xf32> to vector<8x1xf32>
    %25 = vector.broadcast %24 : vector<8x1xf32> to vector<8x23xf32>
    %26 = arith.divf %22, %25 : vector<8x23xf32>
    %c0_17 = arith.constant 0 : index
    %c0_18 = arith.constant 0 : index
    %27 = vector.load %arg8[%c0_17, %c0_18] : memref<8x23xf32, #tpu.memory_space<vmem>>, vector<8x23xf32>
    tpu.vector_store %arg8[%c0_17, %c0_18], %26 {strides = array<i32>} : memref<8x23xf32, #tpu.memory_space<vmem>>, vector<8x23xf32>,
    return
  }
  func.func @transform_0(%arg0: i32) -> (i32, i32) {
    %c0_i32 = arith.constant 0 : i32
    %c0_i32_0 = arith.constant 0 : i32
    return %arg0, %c0_i32 : i32, i32
  }
  func.func @transform_1(%arg0: i32) -> (i32, i32) {
    %c0_i32 = arith.constant 0 : i32
    %c0_i32_0 = arith.constant 0 : i32
    return %arg0, %c0_i32 : i32, i32
  }
  func.func @transform_2(%arg0: i32) -> (i32, i32) {
    %c0_i32 = arith.constant 0 : i32
    %c0_i32_0 = arith.constant 0 : i32
    %c0_i32_1 = arith.constant 0 : i32
    return %c0_i32, %c0_i32_0 : i32, i32
  }
  func.func @transform_3(%arg0: i32) -> (i32, i32) {
    %c0_i32 = arith.constant 0 : i32
    %c0_i32_0 = arith.constant 0 : i32
    %c0_i32_1 = arith.constant 0 : i32
    return %c0_i32, %c0_i32_0 : i32, i32
  }
  func.func @transform_4(%arg0: i32) -> (i32, i32) {
    %c0_i32 = arith.constant 0 : i32
    %c0_i32_0 = arith.constant 0 : i32
    %c0_i32_1 = arith.constant 0 : i32
    return %c0_i32, %c0_i32_0 : i32, i32
  }
  func.func @transform_5(%arg0: i32) -> (i32, i32) {
    %c0_i32 = arith.constant 0 : i32
    %c0_i32_0 = arith.constant 0 : i32
    %c0_i32_1 = arith.constant 0 : i32
    return %c0_i32, %c0_i32_0 : i32, i32
  }
  func.func @transform_6(%arg0: i32) -> (i32, i32) {
    %c0_i32 = arith.constant 0 : i32
    %c0_i32_0 = arith.constant 0 : i32
    %c0_i32_1 = arith.constant 0 : i32
    return %c0_i32, %c0_i32_0 : i32, i32
  }
  func.func @transform_7(%arg0: i32) -> (i32, i32) {
    %c0_i32 = arith.constant 0 : i32
    %c0_i32_0 = arith.constant 0 : i32
    return %arg0, %c0_i32 : i32, i32
  }
}

</mosaic_0001>

<llo_original>
// kernel: tpu_custom_call.1
$region0: #{tpu_custom_call.1}
  #allocation0 [shape = 'u32[]', space=smem, size = 0x4, offset = 0x4, fixed_abs, tag = 'smem constant byte address 0x4 - core index']
  #allocation1 [shape = 'u32[144,128]{1,0:T(1,128)}', space=vmem, size = 0x12000, scoped, tag = 'internal scratch']
  %s0 = inlined_call_operand.vmem [shape: f32[8,42], index: 0, kind: input, shape index: {}]
  %s1 = inlined_call_operand.vmem [shape: f32[8,128], index: 1, kind: input, shape index: {}]
  %s2 = inlined_call_operand.vmem [shape: f32[42,128], index: 2, kind: input, shape index: {}]
  %s3 = inlined_call_operand.vmem [shape: f32[1,128], index: 3, kind: input, shape index: {}]
  %s4 = inlined_call_operand.vmem [shape: f32[1,128], index: 4, kind: input, shape index: {}]
  %s5 = inlined_call_operand.vmem [shape: f32[128,23], index: 5, kind: input, shape index: {}]
  %s6 = inlined_call_operand.vmem [shape: f32[1,23], index: 6, kind: input, shape index: {}]
  %s7 = inlined_call_operand.hbm [shape: f32[8,23], index: 7, kind: output, shape index: {}]
  %s8 = sld [smem:[#allocation0]]
  $region38: #{tpu_custom_call.1} parent=0
    _
  %s10 = ssub.s32 1, %s8
  %s11 = scalar_select 0, %s10, %s8
  $region1: #{tpu_custom_call.1} parent=0
    #allocation2 [shape = 'u8[4096]{0}', space=vmem, size = 0x1000, scoped, tag = 'output window, operand 0, single buffered']
    #allocation3 [shape = 's32[1]{0}', space=sflag, size = 0x4, scoped, tag = 'scoped memory for tpu_custom_call.1']
    %12 = vsyncpa [#allocation3], 0
    // Predicated region
    $region2: #{tpu_custom_call.1} parent=1 // pred_check
      _
    $region3: #{tpu_custom_call.1} parent=1 // pred_check_branch
      %14 = sbr.rel (0) target = $region5
    $region4: #{tpu_custom_call.1} parent=1 // pred_region
      _
    $region5: #{tpu_custom_call.1} parent=1 // pred_fallthru
      _
    // Predicated region
    $region6: #{tpu_custom_call.1} parent=1 // pred_check
      _
    $region7: #{tpu_custom_call.1} parent=1 // pred_check_branch
      %16 = sbr.rel (0) target = $region9
    $region8: #{tpu_custom_call.1} parent=1 // pred_region
      _
    $region9: #{tpu_custom_call.1} parent=1 // pred_fallthru
      _
    // Predicated region
    $region10: #{tpu_custom_call.1} parent=1 // pred_check
      _
    $region11: #{tpu_custom_call.1} parent=1 // pred_check_branch
      %18 = sbr.rel (0) target = $region13
    $region12: #{tpu_custom_call.1} parent=1 // pred_region
      _
    $region13: #{tpu_custom_call.1} parent=1 // pred_fallthru
      _
    // Predicated region
    $region14: #{tpu_custom_call.1} parent=1 // pred_check
      _
    $region15: #{tpu_custom_call.1} parent=1 // pred_check_branch
      %20 = sbr.rel (0) target = $region17
    $region16: #{tpu_custom_call.1} parent=1 // pred_region
      _
    $region17: #{tpu_custom_call.1} parent=1 // pred_fallthru
      _
    // Predicated region
    $region18: #{tpu_custom_call.1} parent=1 // pred_check
      _
    $region19: #{tpu_custom_call.1} parent=1 // pred_check_branch
      %22 = sbr.rel (0) target = $region21
    $region20: #{tpu_custom_call.1} parent=1 // pred_region
      _
    $region21: #{tpu_custom_call.1} parent=1 // pred_fallthru
      _
    // Predicated region
    $region22: #{tpu_custom_call.1} parent=1 // pred_check
      _
    $region23: #{tpu_custom_call.1} parent=1 // pred_check_branch
      %24 = sbr.rel (0) target = $region25
    $region24: #{tpu_custom_call.1} parent=1 // pred_region
      _
    $region25: #{tpu_custom_call.1} parent=1 // pred_fallthru
      _
    // Predicated region
    $region26: #{tpu_custom_call.1} parent=1 // pred_check
      _
    $region27: #{tpu_custom_call.1} parent=1 // pred_check_branch
      %26 = sbr.rel (0) target = $region29
    $region28: #{tpu_custom_call.1} parent=1 // pred_region
      _
    $region29: #{tpu_custom_call.1} parent=1 // pred_fallthru
      _
    %v27 = vld [vmem:[%s0] sm:$0xff]
    %v28 = vld [vmem:[%s2] sm:$0xff]
    %v29 = vld [vmem:[%s2 + $0x8] sm:$0xff]
    %v30 = vld [vmem:[%s2 + $0x10] sm:$0xff]
    %v31 = vld [vmem:[%s2 + $0x18] sm:$0xff]
    %v32 = vld [vmem:[%s2 + $0x20] sm:$0xff]
    %v33 = vld [vmem:[%s2 + $0x28] sm:$0x3]
    %v34 = vld [vmem:[%s3] sm:$0x1]
    %v36 = vlaneseq
    %v37 = vshrl.u32 %v36, 7
    %v38 = vsub.s32 0, %v37
    %v39 = vrot.slane %v34, %v38
    %vm41 = vcmask 343040
    %v43 = vsel %vm41, %v27, 0
    %vm45 = vcmask 1041408
    %v47 = vsel %vm45, %v33, 0
    %49 = vmatprep.subr.mxu0 0.0
    %50 = vmatpush1.msra.mxu0 0.0
    %51 = vmatprep.subr.mxu0 0.0
    %52 = vmatpush1.msra.mxu0 0.0
    %53 = vmatprep.subr.mxu0 0.0
    %54 = vmatpush1.msra.mxu0 0.0
    %55 = vmatprep.subr.mxu0 0.0
    %56 = vmatpush1.msra.mxu0 0.0
    %57 = vmatprep.subr.mxu0 0.0
    %58 = vmatpush1.msra.mxu0 0.0
    %59 = vmatprep.subr.mxu0 0.0
    %60 = vmatpush1.msra.mxu0 0.0
    %61 = vmatprep.subr.mxu0 0.0
    %62 = vmatpush1.msra.mxu0 0.0
    %63 = vmatprep.subr.mxu0 0.0
    %64 = vmatpush1.msra.mxu0 0.0
    %65 = vmatprep.subr.mxu0 0.0
    %66 = vmatpush1.msra.mxu0 0.0
    %67 = vmatprep.subr.mxu0 0.0
    %68 = vmatpush1.msra.mxu0 0.0
    %69 = vmatprep.subr.mxu0 0.0
    %70 = vmatpush1.msra.mxu0 %v47
    %71 = vmatprep.subr.mxu0 0.0
    %72 = vmatpush1.msra.mxu0 %v32
    %73 = vmatprep.subr.mxu0 0.0
    %74 = vmatpush1.msra.mxu0 %v31
    %75 = vmatprep.subr.mxu0 0.0
    %76 = vmatpush1.msra.mxu0 %v30
    %77 = vmatprep.subr.mxu0 0.0
    %78 = vmatpush1.msra.mxu0 %v29
    %79 = vmatprep.subr.mxu0 0.0
    %80 = vmatpush1.msra.mxu0 %v28
    %81 = vmatprep.subr.mxu0 0.0
    %82 = vmatpush2.msra.mxu0 0.0
    %83 = vmatprep.subr.mxu0 0.0
    %84 = vmatpush2.msra.mxu0 0.0
    %85 = vmatprep.subr.mxu0 0.0
    %86 = vmatpush2.msra.mxu0 0.0
    %87 = vmatprep.subr.mxu0 0.0
    %88 = vmatpush2.msra.mxu0 0.0
    %89 = vmatprep.subr.mxu0 0.0
    %90 = vmatpush2.msra.mxu0 0.0
    %91 = vmatprep.subr.mxu0 0.0
    %92 = vmatpush2.msra.mxu0 0.0
    %93 = vmatprep.subr.mxu0 0.0
    %94 = vmatpush2.msra.mxu0 0.0
    %95 = vmatprep.subr.mxu0 0.0
    %96 = vmatpush2.msra.mxu0 0.0
    %97 = vmatprep.subr.mxu0 0.0
    %98 = vmatpush2.msra.mxu0 0.0
    %99 = vmatprep.subr.mxu0 0.0
    %100 = vmatpush2.msra.mxu0 0.0
    %101 = vmatprep.subr.mxu0 0.0
    %102 = vmatpush2.msra.mxu0 0.0
    %103 = vmatprep.subr.mxu0 0.0
    %104 = vmatpush2.msra.mxu0 0.0
    %105 = vmatprep.subr.mxu0 0.0
    %106 = vmatpush2.msra.mxu0 0.0
    %107 = vmatprep.subr.mxu0 0.0
    %108 = vmatpush2.msra.mxu0 0.0
    %109 = vmatprep.subr.mxu0 0.0
    %110 = vmatpush2.msra.mxu0 0.0
    %111 = vmatprep.subr.mxu0 0.0
    %112 = vmatpush2.msra.mxu0 0.0
    %113 = vmatprep.mubr.f32.mxu0 0.0
    %114 = vmatmul.mubr.f32.gmra.mxu0 %v43
    %v115 = vpop.f32.mrf.mxu0
    %v116 = vadd.f32 %v39, %v115
    %v117 = vpop.f32.mrf.mxu0
    %118 = vdwg.mxu0
    %v119 = vld [vmem:[%s4] sm:$0x1]
    %v120 = vld [vmem:[%s1] sm:$0xff]
    %v122 = vlaneseq
    %v123 = vshrl.u32 %v122, 7
    %v124 = vsub.s32 0, %v123
    %v125 = vrot.slane %v119, %v124
    %v127 = vmul.f32 %v125, %v120
    %v128 = vadd.f32 %v116, %v127
    %v129 = vmax.f32 %v128, 0.0
    %v130 = vld [vmem:[%s5] sm:$0xff]
    %v131 = vld [vmem:[%s5 + $0x8] sm:$0xff]
    %v132 = vld [vmem:[%s5 + $0x10] sm:$0xff]
    %v133 = vld [vmem:[%s5 + $0x18] sm:$0xff]
    %v134 = vld [vmem:[%s5 + $0x20] sm:$0xff]
    %v135 = vld [vmem:[%s5 + $0x28] sm:$0xff]
    %v136 = vld [vmem:[%s5 + $0x30] sm:$0xff]
    %v137 = vld [vmem:[%s5 + $0x38] sm:$0xff]
    %v138 = vld [vmem:[%s5 + $0x40] sm:$0xff]
    %v139 = vld [vmem:[%s5 + $0x48] sm:$0xff]
    %v140 = vld [vmem:[%s5 + $0x50] sm:$0xff]
    %v141 = vld [vmem:[%s5 + $0x58] sm:$0xff]
    %v142 = vld [vmem:[%s5 + $0x60] sm:$0xff]
    %v143 = vld [vmem:[%s5 + $0x68] sm:$0xff]
    %v144 = vld [vmem:[%s5 + $0x70] sm:$0xff]
    %v145 = vld [vmem:[%s5 + $0x78] sm:$0xff]
    %v146 = vld [vmem:[%s6] sm:$0x1]
    %v148 = vlaneseq
    %v149 = vshrl.u32 %v148, 7
    %v150 = vsub.s32 0, %v149
    %v151 = vrot.slane %v146, %v150
    %153 = vmatprep.subr.mxu0 0.0
    %154 = vmatpush1.msra.mxu0 %v145
    %155 = vmatprep.subr.mxu0 0.0
    %156 = vmatpush1.msra.mxu0 %v144
    %157 = vmatprep.subr.mxu0 0.0
    %158 = vmatpush1.msra.mxu0 %v143
    %159 = vmatprep.subr.mxu0 0.0
    %160 = vmatpush1.msra.mxu0 %v142
    %161 = vmatprep.subr.mxu0 0.0
    %162 = vmatpush1.msra.mxu0 %v141
    %163 = vmatprep.subr.mxu0 0.0
    %164 = vmatpush1.msra.mxu0 %v140
    %165 = vmatprep.subr.mxu0 0.0
    %166 = vmatpush1.msra.mxu0 %v139
    %167 = vmatprep.subr.mxu0 0.0
    %168 = vmatpush1.msra.mxu0 %v138
    %169 = vmatprep.subr.mxu0 0.0
    %170 = vmatpush1.msra.mxu0 %v137
    %171 = vmatprep.subr.mxu0 0.0
    %172 = vmatpush1.msra.mxu0 %v136
    %173 = vmatprep.subr.mxu0 0.0
    %174 = vmatpush1.msra.mxu0 %v135
    %175 = vmatprep.subr.mxu0 0.0
    %176 = vmatpush1.msra.mxu0 %v134
    %177 = vmatprep.subr.mxu0 0.0
    %178 = vmatpush1.msra.mxu0 %v133
    %179 = vmatprep.subr.mxu0 0.0
    %180 = vmatpush1.msra.mxu0 %v132
    %181 = vmatprep.subr.mxu0 0.0
    %182 = vmatpush1.msra.mxu0 %v131
    %183 = vmatprep.subr.mxu0 0.0
    %184 = vmatpush1.msra.mxu0 %v130
    %185 = vmatprep.subr.mxu0 0.0
    %186 = vmatpush2.msra.mxu0 0.0
    %187 = vmatprep.subr.mxu0 0.0
    %188 = vmatpush2.msra.mxu0 0.0
    %189 = vmatprep.subr.mxu0 0.0
    %190 = vmatpush2.msra.mxu0 0.0
    %191 = vmatprep.subr.mxu0 0.0
    %192 = vmatpush2.msra.mxu0 0.0
    %193 = vmatprep.subr.mxu0 0.0
    %194 = vmatpush2.msra.mxu0 0.0
    %195 = vmatprep.subr.mxu0 0.0
    %196 = vmatpush2.msra.mxu0 0.0
    %197 = vmatprep.subr.mxu0 0.0
    %198 = vmatpush2.msra.mxu0 0.0
    %199 = vmatprep.subr.mxu0 0.0
    %200 = vmatpush2.msra.mxu0 0.0
    %201 = vmatprep.subr.mxu0 0.0
    %202 = vmatpush2.msra.mxu0 0.0
    %203 = vmatprep.subr.mxu0 0.0
    %204 = vmatpush2.msra.mxu0 0.0
    %205 = vmatprep.subr.mxu0 0.0
    %206 = vmatpush2.msra.mxu0 0.0
    %207 = vmatprep.subr.mxu0 0.0
    %208 = vmatpush2.msra.mxu0 0.0
    %209 = vmatprep.subr.mxu0 0.0
    %210 = vmatpush2.msra.mxu0 0.0
    %211 = vmatprep.subr.mxu0 0.0
    %212 = vmatpush2.msra.mxu0 0.0
    %213 = vmatprep.subr.mxu0 0.0
    %214 = vmatpush2.msra.mxu0 0.0
    %215 = vmatprep.subr.mxu0 0.0
    %216 = vmatpush2.msra.mxu0 0.0
    %217 = vmatprep.mubr.f32.mxu0 0.0
    %218 = vmatmul.mubr.f32.gmra.mxu0 %v129
    %v219 = vpop.f32.mrf.mxu0
    %v220 = vadd.f32 %v151, %v219
    %v221 = vpop.f32.mrf.mxu0
    %222 = vdwg.mxu0
    %vm223 = vcmask 187392
    %v224 = vsel %vm223, %v220, -inf
    %225 = vmax.xlane.f32.xlu0 %v224
    %v226 = vpop.xlane.xlu0 %225
    %v227 = vsub.f32 %v220, %v226
    %v228 = vmul.f32 %v227, 1.442695
    %v229 = vpow.pop %v228
    %v230 = vsel %vm223, %v229, 0.0
    %231 = vadd.xlane.f32.xlu0 %v230
    %v232 = vpop.xlane.xlu0 %231
    %v233 = vrcp.pop %v232
    %v234 = vmul.f32 %v229, %v233
    %235 = vst.msk [vmem:[#allocation2] sm:$0xff] %vm223, %v234
    // Predicated region
    $region30: #{tpu_custom_call.1} parent=1 // pred_check
      _
    $region31: #{tpu_custom_call.1} parent=1 // pred_check_branch
      %237 = sbr.rel (0) target = $region33
    $region32: #{tpu_custom_call.1} parent=1 // pred_region
      %s239 = ssub.s32 128, 128
      %240 = vsyncadd [#allocation3], %s239
      %s242 = sshll.u32 [#allocation2], 4
      %s243 = int_to_ptr.vmem [resolvable:$true] %s242
      %245 = dma.vmem_to_hbm [thread:$0]  %s243, 128, %s7, [#allocation3]
    $region33: #{tpu_custom_call.1} parent=1 // pred_fallthru
      _
    // Predicated region
    $region34: #{tpu_custom_call.1} parent=1 // pred_check
      _
    $region35: #{tpu_custom_call.1} parent=1 // pred_check_branch
      %247 = sbr.rel (0) target = $region37
    $region36: #{tpu_custom_call.1} parent=1 // pred_region
      %248 = dma.done [#allocation3], 128
    $region37: #{tpu_custom_call.1} parent=1 // pred_fallthru
      _
    %249 = vsyncpa [#allocation3], 1

</llo_original>
